<compile_context>
chip_gen: v5e
topology: v5e:2x2
jax: 0.10.0
libtpu: 0.0.40
codegen_flags: <defaults>
</compile_context>

<pallas_src>
import numpy as np
import jax
import jax.numpy as jnp
from jax import lax
from jax.experimental import pallas as pl
from jax.experimental.pallas import tpu as pltpu


LANE = 128          # lane width / padding unit
TB_MAX = 256        # max batch tile (matmul M rows), multiple of 8
LP_TILE_MAX = 2048  # max contraction tile, multiple of 128


def _round_up(x, m):
    return ((x + m - 1) // m) * m


# --------------------------------------------------------------------------
# Parameter construction (plain JAX / numpy glue, deterministic)
# --------------------------------------------------------------------------
def hippo_matrix(N):
    A = np.zeros((N, N), dtype=np.float32)
    for i in range(N):
        for j in range(N):
            if i > j:
                A[i, j] = -((2 * i + 1) ** 0.5) * ((2 * j + 1) ** 0.5)
            elif i == j:
                A[i, j] = -(i + 1)
    return jnp.asarray(A)


def make_s4_params(key, N=3, P=64, delta=1.0):
    kB, kC = jax.random.split(key)
    A = hippo_matrix(N)
    B = jax.random.normal(kB, (N, P), dtype=jnp.float32)
    C = jax.random.normal(kC, (P, N), dtype=jnp.float32)
    I = jnp.eye(N, dtype=jnp.float32)
    Am = jnp.linalg.inv(I - (delta / 2.0) * A)   # discretization glue
    Ap = I + (delta / 2.0) * A
    A1 = Am @ Ap                                  # (N, N)
    B1 = Am @ (delta * B)                         # (N, P)
    C1 = C                                        # (P, N)
    return A1, B1, C1


def build_kernel_weights(A1, B1, C1, L):
    """Host-side precompute (ONCE per parameter set): folded, padded weights.

    K[i*P + q, p] = (C1 @ A1^i @ B1)[p, q]   so that   y = x_flat @ K.
    Returns (L*P, PPAD) bf16, PPAD = round_up(P, 128).
    """
    N, P = B1.shape
    PPAD = _round_up(P, LANE)

    def step(ct, _):
        return A1 @ ct, ct.T                      # emit (A1^i @ B1)^T  (P, N)

    _, ws = lax.scan(step, B1, None, length=L)    # (L, P, N)
    K = ws @ C1.T                                 # (L, P, P), indexed [i, q, p]
    K = K.reshape(L * P, P)
    K = jnp.pad(K, ((0, 0), (0, PPAD - P)))       # (L*P, PPAD), lane-dense
    return K.astype(jnp.bfloat16)


# --------------------------------------------------------------------------
# Pallas kernel: single matmul with a reduction grid axis over L*P
# --------------------------------------------------------------------------
def s4_kernel(x_ref, k_ref, y_ref, acc_ref):
    # x_ref   : (TB, LP_TILE)   bf16   flattened input chunk for this batch tile
    # k_ref   : (LP_TILE, PPAD) bf16   folded SSM kernel weights chunk
    # y_ref   : (TB, PPAD)      f32    output slab (first P lanes valid)
    # acc_ref : (TB, PPAD)      f32    VMEM accumulator (resident across axis 1)
    l = pl.program_id(1)

    @pl.when(l == 0)
    def _():
        acc_ref[...] = jnp.zeros_like(acc_ref)

    acc_ref[...] += jnp.dot(x_ref[...], k_ref[...],
                            preferred_element_type=jnp.float32)

    @pl.when(l == pl.num_programs(1) - 1)
    def _():
        y_ref[...] = acc_ref[...].astype(y_ref.dtype)


def s4_forward_batched(xb, K):
    """xb: (B, L, P) -> y: (B, P) float32.  K: (L*P, PPAD) from build_kernel_weights."""
    B, L, P = xb.shape
    LP, PPAD = K.shape
    assert LP == L * P, "K does not match (L, P) of the input"

    # --- contraction axis padding / tiling (reduction axis = last grid dim) ---
    LPp = _round_up(LP, LANE)
    lp_tile = min(LP_TILE_MAX, LPp)
    LPp = _round_up(LPp, lp_tile)

    # --- batch axis padding / tiling ---
    # TODO(synk): for large B on v7x, keep Bp // tb >= 2 so the "parallel"
    # batch axis actually shards across both TensorCores.
    Bp = _round_up(B, 8)
    tb = min(TB_MAX, Bp)
    Bp = _round_up(Bp, tb)

    x_flat = xb.reshape(B, LP).astype(jnp.bfloat16)
    x_flat = jnp.pad(x_flat, ((0, Bp - B), (0, LPp - LP)))
    Kp = jnp.pad(K.astype(jnp.bfloat16), ((0, LPp - LP), (0, 0)))

    grid = (Bp // tb, LPp // lp_tile)

    cost = pl.CostEstimate(
        flops=2 * Bp * LPp * PPAD,
        transcendentals=0,
        bytes_accessed=Bp * LPp * 2 + LPp * PPAD * 2 + Bp * PPAD * 4,
    )

    y = pl.pallas_call(
        s4_kernel,
        out_shape=jax.ShapeDtypeStruct((Bp, PPAD), jnp.float32),
        grid_spec=pltpu.PrefetchScalarGridSpec(
            num_scalar_prefetch=0,
            grid=grid,
            in_specs=[
                pl.BlockSpec((tb, lp_tile), lambda b, l: (b, l)),
                pl.BlockSpec((lp_tile, PPAD), lambda b, l: (l, 0)),
            ],
            out_specs=pl.BlockSpec((tb, PPAD), lambda b, l: (b, 0)),
            scratch_shapes=[pltpu.VMEM((tb, PPAD), jnp.float32)],
        ),
        compiler_params=pltpu.CompilerParams(
            dimension_semantics=("parallel", "arbitrary"),
            vmem_limit_bytes=48 * 1024 * 1024),
        cost_estimate=cost,
    )(x_flat, Kp)
    return y[:B, :P]


def s4_forward(x, K):
    """Single-sequence forward matching the PyTorch module: x (L, P) -> y (P,)."""
    return s4_forward_batched(x[None], K)[0]


# --------------------------------------------------------------------------
# Pure-JAX reference (mirrors the PyTorch loops exactly)
# --------------------------------------------------------------------------
def s4_forward_ref(x, A1, B1, C1):
    L, P = x.shape
    y = jnp.zeros((P,), dtype=jnp.float32)
    ct = B1
    for i in range(L):
        y = y + (C1 @ ct) @ x[i]     # == K1[i] @ x[i]
        ct = A1 @ ct
    return y


# --------------------------------------------------------------------------
if __name__ == "__main__":
    N, P, L, delta = 3, 64, 8, 1.0
    B = 8

    key = jax.random.PRNGKey(0)
    kparam, kx = jax.random.split(key)
    A1, B1, C1 = make_s4_params(kparam, N=N, P=P, delta=delta)
    xb = jax.random.normal(kx, (B, L, P), dtype=jnp.float32)

    # Hoisted weight construction (once per parameter set).
    K = jax.block_until_ready(build_kernel_weights(A1, B1, C1, L))

    # Batched kernel call (grid over batch "parallel", L*P reduction "arbitrary").
    yb = jax.block_until_ready(s4_forward_batched(xb, K))

    # Single-sequence forward (original module signature).
    y0 = jax.block_until_ready(s4_forward(xb[0], K))

    # Validate against the pure-JAX mirror of the PyTorch loops (bf16 inputs,
    # f32 accumulation -> loose-ish tolerances).
    for b in range(B):
        y_ref = s4_forward_ref(xb[b], A1, B1, C1)
        np.testing.assert_allclose(np.asarray(yb[b]), np.asarray(y_ref),
                                   rtol=2e-2, atol=5e-1)
    np.testing.assert_allclose(np.asarray(y0), np.asarray(yb[0]),
                               rtol=1e-5, atol=1e-5)

    print("KERNEL_OK")
</pallas_src>

<mosaic_0001>
module attributes {stable_mosaic.version = 11 : i64} {
  func.func @s4_kernel(%arg0: i32, %arg1: i32, %arg2: memref<8x512xbf16, #tpu.memory_space<vmem>>, %arg3: memref<512x128xbf16, #tpu.memory_space<vmem>>, %arg4: memref<8x128xf32, #tpu.memory_space<vmem>>, %arg5: memref<8x128xf32, #tpu.memory_space<vmem>>) attributes {dimension_semantics = [#tpu.dimension_semantics<parallel>, #tpu.dimension_semantics<arbitrary>], iteration_bounds = array<i64: 1, 1>, scalar_prefetch = 0 : i64, scratch_operands = 1 : i64, tpu.core_type = #tpu.core_type<tc>, window_params = [{transform_indices = @transform_0, window_bounds = array<i64: 8, 512>}, {transform_indices = @transform_1, window_bounds = array<i64: 512, 128>}, {transform_indices = @transform_2, window_bounds = array<i64: 8, 128>}]} {
    %c0_i32 = arith.constant 0 : i32
    %0 = arith.cmpi eq, %arg1, %c0_i32 : i32
    %1 = arith.extui %0 : i1 to i32
    %c0_i32_0 = arith.constant 0 : i32
    %2 = arith.cmpi ne, %1, %c0_i32_0 : i32
    scf.if %2 {
      %cst_10 = arith.constant 0.000000e+00 : f32
      %12 = vector.broadcast %cst_10 : f32 to vector<8x128xf32>
      %c0_11 = arith.constant 0 : index
      %c0_12 = arith.constant 0 : index
      %13 = vector.load %arg5[%c0_11, %c0_12] : memref<8x128xf32, #tpu.memory_space<vmem>>, vector<8x128xf32>
      tpu.vector_store %arg5[%c0_11, %c0_12], %12 {strides = array<i32>} : memref<8x128xf32, #tpu.memory_space<vmem>>, vector<8x128xf32>,
    } else {
    }
    %c0 = arith.constant 0 : index
    %c0_1 = arith.constant 0 : index
    %3 = vector.load %arg5[%c0, %c0_1] : memref<8x128xf32, #tpu.memory_space<vmem>>, vector<8x128xf32>
    %c0_2 = arith.constant 0 : index
    %c0_3 = arith.constant 0 : index
    %4 = vector.load %arg2[%c0_2, %c0_3] : memref<8x512xbf16, #tpu.memory_space<vmem>>, vector<8x512xbf16>
    %c0_4 = arith.constant 0 : index
    %c0_5 = arith.constant 0 : index
    %5 = vector.load %arg3[%c0_4, %c0_5] : memref<512x128xbf16, #tpu.memory_space<vmem>>, vector<512x128xbf16>
    %cst = arith.constant dense<0.000000e+00> : vector<8x128xf32>
    %6 = tpu.matmul %4, %5, %cst {dimension_numbers = #tpu.dot_dimension_numbers<[1], [0], [0], [1], [0, 0, 1, 1], [], []>} : vector<8x512xbf16>, vector<512x128xbf16>, vector<8x128xf32> -> vector<8x128xf32>
    %7 = arith.addf %3, %6 : vector<8x128xf32>
    %c0_6 = arith.constant 0 : index
    %c0_7 = arith.constant 0 : index
    %8 = vector.load %arg5[%c0_6, %c0_7] : memref<8x128xf32, #tpu.memory_space<vmem>>, vector<8x128xf32>
    tpu.vector_store %arg5[%c0_6, %c0_7], %7 {strides = array<i32>} : memref<8x128xf32, #tpu.memory_space<vmem>>, vector<8x128xf32>,
    %c0_i32_8 = arith.constant 0 : i32
    %9 = arith.cmpi eq, %arg1, %c0_i32_8 : i32
    %10 = arith.extui %9 : i1 to i32
    %c0_i32_9 = arith.constant 0 : i32
    %11 = arith.cmpi ne, %10, %c0_i32_9 : i32
    scf.if %11 {
      %c0_10 = arith.constant 0 : index
      %c0_11 = arith.constant 0 : index
      %12 = vector.load %arg5[%c0_10, %c0_11] : memref<8x128xf32, #tpu.memory_space<vmem>>, vector<8x128xf32>
      %c0_12 = arith.constant 0 : index
      %c0_13 = arith.constant 0 : index
      %13 = vector.load %arg4[%c0_12, %c0_13] : memref<8x128xf32, #tpu.memory_space<vmem>>, vector<8x128xf32>
      tpu.vector_store %arg4[%c0_12, %c0_13], %12 {strides = array<i32>} : memref<8x128xf32, #tpu.memory_space<vmem>>, vector<8x128xf32>,
    } else {
    }
    return
  }
  func.func @transform_0(%arg0: i32, %arg1: i32) -> (i32, i32) {
    %c0_i32 = arith.constant 0 : i32
    return %arg0, %arg1 : i32, i32
  }
  func.func @transform_1(%arg0: i32, %arg1: i32) -> (i32, i32) {
    %c0_i32 = arith.constant 0 : i32
    %c0_i32_0 = arith.constant 0 : i32
    return %arg1, %c0_i32 : i32, i32
  }
  func.func @transform_2(%arg0: i32, %arg1: i32) -> (i32, i32) {
    %c0_i32 = arith.constant 0 : i32
    %c0_i32_0 = arith.constant 0 : i32
    return %arg0, %c0_i32 : i32, i32
  }
}

</mosaic_0001>

<llo_original>
// kernel: tpu_custom_call.1
$region0: #{tpu_custom_call.1}
  #allocation0 [shape = 'u32[]', space=smem, size = 0x4, offset = 0x4, fixed_abs, tag = 'smem constant byte address 0x4 - core index']
  #allocation1 [shape = 'u32[72,128]{1,0:T(1,128)}', space=vmem, size = 0x9000, scoped, tag = 'internal scratch']
  #allocation2 [shape = 'f32[8,128]{1,0:T(8,128)}', space=vmem, size = 0x1000, scoped, tag = 'scratch operand']
  %s0 = inlined_call_operand.hbm [shape: bf16[8,512], index: 0, kind: input, shape index: {}]
  %s1 = inlined_call_operand.hbm [shape: bf16[512,128], index: 1, kind: input, shape index: {}]
  %s2 = inlined_call_operand.hbm [shape: f32[8,128], index: 2, kind: output, shape index: {}]
  %s3 = sld [smem:[#allocation0]]
  $region34: #{tpu_custom_call.1} parent=0
    _
  %s5 = ssub.s32 1, %s3
  %s6 = scalar_select 0, %s5, %s3
  $region1: #{tpu_custom_call.1} parent=0
    #allocation3 [shape = 'u8[8192]{0}', space=vmem, size = 0x2000, scoped, tag = 'input window, operand 0, single buffered']
    #allocation4 [shape = 's32[1]{0}', space=sflag, size = 0x4, scoped, tag = 'scoped memory for tpu_custom_call.1']
    #allocation5 [shape = 's32[1]{0}', space=sflag, size = 0x4, scoped, tag = 'scoped memory for tpu_custom_call.1']
    #allocation6 [shape = 'u8[131072]{0}', space=vmem, size = 0x20000, scoped, tag = 'input window, operand 1, single buffered']
    #allocation7 [shape = 's32[1]{0}', space=sflag, size = 0x4, scoped, tag = 'scoped memory for tpu_custom_call.1']
    #allocation8 [shape = 'u8[4096]{0}', space=vmem, size = 0x1000, scoped, tag = 'output window, operand 0, single buffered']
    %7 = vsyncpa [#allocation4], 0
    %8 = vsyncpa [#allocation7], 0
    %9 = vsyncpa [#allocation5], 0
    // Predicated region
    $region2: #{tpu_custom_call.1} parent=1 // pred_check
      _
    $region3: #{tpu_custom_call.1} parent=1 // pred_check_branch
      %11 = sbr.rel (0) target = $region5
    $region4: #{tpu_custom_call.1} parent=1 // pred_region
      %13 = vsyncadd [#allocation4], 0
      %s15 = sshll.u32 %s0, 4
      %s16 = int_to_ptr.hbm [resolvable:$true] %s15
      %s17 = sshll.u32 [#allocation3], 4
      %s18 = int_to_ptr.vmem [resolvable:$true] %s17
      %20 = dma.hbm_to_vmem [thread:$0]  %s16, 256, %s18, [#allocation4]
    $region5: #{tpu_custom_call.1} parent=1 // pred_fallthru
      _
    // Predicated region
    $region6: #{tpu_custom_call.1} parent=1 // pred_check
      _
    $region7: #{tpu_custom_call.1} parent=1 // pred_check_branch
      %22 = sbr.rel (0) target = $region9
    $region8: #{tpu_custom_call.1} parent=1 // pred_region
      %24 = vsyncadd [#allocation7], 0
      %s25 = sshll.u32 %s1, 4
      %s26 = int_to_ptr.hbm [resolvable:$true] %s25
      %s27 = sshll.u32 [#allocation6], 4
      %s28 = int_to_ptr.vmem [resolvable:$true] %s27
      %33 = dma.hbm_to_vmem [thread:$0]  %s26, 4096, %s28, [#allocation7], 64, 64, 4
    $region9: #{tpu_custom_call.1} parent=1 // pred_fallthru
      _
    // Predicated region
    $region10: #{tpu_custom_call.1} parent=1 // pred_check
      _
    $region11: #{tpu_custom_call.1} parent=1 // pred_check_branch
      %35 = sbr.rel (0) target = $region13
    $region12: #{tpu_custom_call.1} parent=1 // pred_region
      %37 = dma.done [#allocation4], 256
    $region13: #{tpu_custom_call.1} parent=1 // pred_fallthru
      _
    // Predicated region
    $region14: #{tpu_custom_call.1} parent=1 // pred_check
      _
    $region15: #{tpu_custom_call.1} parent=1 // pred_check_branch
      %39 = sbr.rel (0) target = $region17
    $region16: #{tpu_custom_call.1} parent=1 // pred_region
      %41 = dma.done [#allocation7], 4096
    $region17: #{tpu_custom_call.1} parent=1 // pred_fallthru
      _
    %p42 = scmp.eq.s32.totalorder 0, 0
    // Predicated region
    $region18: #{tpu_custom_call.1} parent=1 // pred_check
      %p43 = pneg %p42
    $region19: #{tpu_custom_call.1} parent=1 // pred_check_branch
      %45 = sbr.rel (%p43) target = $region21
    $region20: #{tpu_custom_call.1} parent=1 // pred_region
      %46 = vst [vmem:[#allocation2] sm:$0xff] 0.0
    $region21: #{tpu_custom_call.1} parent=1 // pred_fallthru
      _
    %v47 = vld [vmem:[#allocation2] sm:$0xff]
    %v48 = vld [vmem:[#allocation3] sm:$0xff]
    %v49 = vld [vmem:[#allocation3 + $0x8] sm:$0xff]
    %v50 = vld [vmem:[#allocation6] sm:$0xf]
    %v51 = vld [vmem:[#allocation6 + $0x4] sm:$0xf]
    %v52 = vld [vmem:[#allocation6 + $0x8] sm:$0xf]
    %v53 = vld [vmem:[#allocation6 + $0xc] sm:$0xf]
    %v54 = vld [vmem:[#allocation6 + $0x10] sm:$0xf]
    %v55 = vld [vmem:[#allocation6 + $0x14] sm:$0xf]
    %v56 = vld [vmem:[#allocation6 + $0x18] sm:$0xf]
    %v57 = vld [vmem:[#allocation6 + $0x1c] sm:$0xf]
    %v58 = vld [vmem:[#allocation6 + $0x20] sm:$0xf]
    %v59 = vld [vmem:[#allocation6 + $0x24] sm:$0xf]
    %v60 = vld [vmem:[#allocation6 + $0x28] sm:$0xf]
    %v61 = vld [vmem:[#allocation6 + $0x2c] sm:$0xf]
    %v62 = vld [vmem:[#allocation6 + $0x30] sm:$0xf]
    %v63 = vld [vmem:[#allocation6 + $0x34] sm:$0xf]
    %v64 = vld [vmem:[#allocation6 + $0x38] sm:$0xf]
    %v65 = vld [vmem:[#allocation6 + $0x3c] sm:$0xf]
    %v66 = vld [vmem:[#allocation6 + $0x40] sm:$0xf]
    %v67 = vld [vmem:[#allocation6 + $0x44] sm:$0xf]
    %v68 = vld [vmem:[#allocation6 + $0x48] sm:$0xf]
    %v69 = vld [vmem:[#allocation6 + $0x4c] sm:$0xf]
    %v70 = vld [vmem:[#allocation6 + $0x50] sm:$0xf]
    %v71 = vld [vmem:[#allocation6 + $0x54] sm:$0xf]
    %v72 = vld [vmem:[#allocation6 + $0x58] sm:$0xf]
    %v73 = vld [vmem:[#allocation6 + $0x5c] sm:$0xf]
    %v74 = vld [vmem:[#allocation6 + $0x60] sm:$0xf]
    %v75 = vld [vmem:[#allocation6 + $0x64] sm:$0xf]
    %v76 = vld [vmem:[#allocation6 + $0x68] sm:$0xf]
    %v77 = vld [vmem:[#allocation6 + $0x6c] sm:$0xf]
    %v78 = vld [vmem:[#allocation6 + $0x70] sm:$0xf]
    %v79 = vld [vmem:[#allocation6 + $0x74] sm:$0xf]
    %v80 = vld [vmem:[#allocation6 + $0x78] sm:$0xf]
    %v81 = vld [vmem:[#allocation6 + $0x7c] sm:$0xf]
    %v82 = vld [vmem:[#allocation6 + $0x80] sm:$0xf]
    %v83 = vld [vmem:[#allocation6 + $0x84] sm:$0xf]
    %v84 = vld [vmem:[#allocation6 + $0x88] sm:$0xf]
    %v85 = vld [vmem:[#allocation6 + $0x8c] sm:$0xf]
    %v86 = vld [vmem:[#allocation6 + $0x90] sm:$0xf]
    %v87 = vld [vmem:[#allocation6 + $0x94] sm:$0xf]
    %v88 = vld [vmem:[#allocation6 + $0x98] sm:$0xf]
    %v89 = vld [vmem:[#allocation6 + $0x9c] sm:$0xf]
    %v90 = vld [vmem:[#allocation6 + $0xa0] sm:$0xf]
    %v91 = vld [vmem:[#allocation6 + $0xa4] sm:$0xf]
    %v92 = vld [vmem:[#allocation6 + $0xa8] sm:$0xf]
    %v93 = vld [vmem:[#allocation6 + $0xac] sm:$0xf]
    %v94 = vld [vmem:[#allocation6 + $0xb0] sm:$0xf]
    %v95 = vld [vmem:[#allocation6 + $0xb4] sm:$0xf]
    %v96 = vld [vmem:[#allocation6 + $0xb8] sm:$0xf]
    %v97 = vld [vmem:[#allocation6 + $0xbc] sm:$0xf]
    %v98 = vld [vmem:[#allocation6 + $0xc0] sm:$0xf]
    %v99 = vld [vmem:[#allocation6 + $0xc4] sm:$0xf]
    %v100 = vld [vmem:[#allocation6 + $0xc8] sm:$0xf]
    %v101 = vld [vmem:[#allocation6 + $0xcc] sm:$0xf]
    %v102 = vld [vmem:[#allocation6 + $0xd0] sm:$0xf]
    %v103 = vld [vmem:[#allocation6 + $0xd4] sm:$0xf]
    %v104 = vld [vmem:[#allocation6 + $0xd8] sm:$0xf]
    %v105 = vld [vmem:[#allocation6 + $0xdc] sm:$0xf]
    %v106 = vld [vmem:[#allocation6 + $0xe0] sm:$0xf]
    %v107 = vld [vmem:[#allocation6 + $0xe4] sm:$0xf]
    %v108 = vld [vmem:[#allocation6 + $0xe8] sm:$0xf]
    %v109 = vld [vmem:[#allocation6 + $0xec] sm:$0xf]
    %v110 = vld [vmem:[#allocation6 + $0xf0] sm:$0xf]
    %v111 = vld [vmem:[#allocation6 + $0xf4] sm:$0xf]
    %v112 = vld [vmem:[#allocation6 + $0xf8] sm:$0xf]
    %v113 = vld [vmem:[#allocation6 + $0xfc] sm:$0xf]
    %v116 = vunpack.c.l.b16 %v48
    %v117 = vunpack.c.h.b16 %v48
    %v118 = vunpack.c.l.b16 %v49
    %v119 = vunpack.c.h.b16 %v49
    %v120 = vpack.c.b16 %v116, %v116
    %v121 = vpack.c.b16 %v117, %v117
    %v122 = vpack.c.b16 %v118, %v118
    %v123 = vpack.c.b16 %v119, %v119
    %v192 = vunpack.c.l.b16 %v50
    %v193 = vunpack.c.l.b16 %v51
    %v194 = vunpack.c.l.b16 %v52
    %v195 = vunpack.c.l.b16 %v53
    %v196 = vunpack.c.l.b16 %v54
    %v197 = vunpack.c.l.b16 %v55
    %v198 = vunpack.c.l.b16 %v56
    %v199 = vunpack.c.l.b16 %v57
    %v200 = vunpack.c.l.b16 %v58
    %v201 = vunpack.c.l.b16 %v59
    %v202 = vunpack.c.l.b16 %v60
    %v203 = vunpack.c.l.b16 %v61
    %v204 = vunpack.c.l.b16 %v62
    %v205 = vunpack.c.l.b16 %v63
    %v206 = vunpack.c.l.b16 %v64
    %v207 = vunpack.c.l.b16 %v65
    %v208 = vunpack.c.l.b16 %v66
    %v209 = vunpack.c.l.b16 %v67
    %v210 = vunpack.c.l.b16 %v68
    %v211 = vunpack.c.l.b16 %v69
    %v212 = vunpack.c.l.b16 %v70
    %v213 = vunpack.c.l.b16 %v71
    %v214 = vunpack.c.l.b16 %v72
    %v215 = vunpack.c.l.b16 %v73
    %v216 = vunpack.c.l.b16 %v74
    %v217 = vunpack.c.l.b16 %v75
    %v218 = vunpack.c.l.b16 %v76
    %v219 = vunpack.c.l.b16 %v77
    %v220 = vunpack.c.l.b16 %v78
    %v221 = vunpack.c.l.b16 %v79
    %v222 = vunpack.c.l.b16 %v80
    %v223 = vunpack.c.l.b16 %v81
    %v224 = vunpack.c.l.b16 %v82
    %v225 = vunpack.c.l.b16 %v83
    %v226 = vunpack.c.l.b16 %v84
    %v227 = vunpack.c.l.b16 %v85
    %v228 = vunpack.c.l.b16 %v86
    %v229 = vunpack.c.l.b16 %v87
    %v230 = vunpack.c.l.b16 %v88
    %v231 = vunpack.c.l.b16 %v89
    %v232 = vunpack.c.l.b16 %v90
    %v233 = vunpack.c.l.b16 %v91
    %v234 = vunpack.c.l.b16 %v92
    %v235 = vunpack.c.l.b16 %v93
    %v236 = vunpack.c.l.b16 %v94
    %v237 = vunpack.c.l.b16 %v95
    %v238 = vunpack.c.l.b16 %v96
    %v239 = vunpack.c.l.b16 %v97
    %v240 = vunpack.c.l.b16 %v98
    %v241 = vunpack.c.l.b16 %v99
    %v242 = vunpack.c.l.b16 %v100
    %v243 = vunpack.c.l.b16 %v101
    %v244 = vunpack.c.l.b16 %v102
    %v245 = vunpack.c.l.b16 %v103
    %v246 = vunpack.c.l.b16 %v104
    %v247 = vunpack.c.l.b16 %v105
    %v248 = vunpack.c.l.b16 %v106
    %v249 = vunpack.c.l.b16 %v107
    %v250 = vunpack.c.l.b16 %v108
    %v251 = vunpack.c.l.b16 %v109
    %v252 = vunpack.c.l.b16 %v110
    %v253 = vunpack.c.l.b16 %v111
    %v254 = vunpack.c.l.b16 %v112
    %v255 = vunpack.c.l.b16 %v113
    %v256 = vpack.c.b16 %v193, %v192
    %v257 = vpack.c.b16 %v195, %v194
    %v258 = vpack.c.b16 %v197, %v196
    %v259 = vpack.c.b16 %v199, %v198
    %v260 = vpack.c.b16 %v201, %v200
    %v261 = vpack.c.b16 %v203, %v202
    %v262 = vpack.c.b16 %v205, %v204
    %v263 = vpack.c.b16 %v207, %v206
    %v264 = vpack.c.b16 %v209, %v208
    %v265 = vpack.c.b16 %v211, %v210
    %v266 = vpack.c.b16 %v213, %v212
    %v267 = vpack.c.b16 %v215, %v214
    %v268 = vpack.c.b16 %v217, %v216
    %v269 = vpack.c.b16 %v219, %v218
    %v270 = vpack.c.b16 %v221, %v220
    %v271 = vpack.c.b16 %v223, %v222
    %v272 = vpack.c.b16 %v225, %v224
    %v273 = vpack.c.b16 %v227, %v226
    %v274 = vpack.c.b16 %v229, %v228
    %v275 = vpack.c.b16 %v231, %v230
    %v276 = vpack.c.b16 %v233, %v232
    %v277 = vpack.c.b16 %v235, %v234
    %v278 = vpack.c.b16 %v237, %v236
    %v279 = vpack.c.b16 %v239, %v238
    %v280 = vpack.c.b16 %v241, %v240
    %v281 = vpack.c.b16 %v243, %v242
    %v282 = vpack.c.b16 %v245, %v244
    %v283 = vpack.c.b16 %v247, %v246
    %v284 = vpack.c.b16 %v249, %v248
    %v285 = vpack.c.b16 %v251, %v250
    %v286 = vpack.c.b16 %v253, %v252
    %v287 = vpack.c.b16 %v255, %v254
    %320 = vmatpush.bf16.msra.mxu0 %v263
    %321 = vmatpush.bf16.msra.mxu0 %v262
    %322 = vmatpush.bf16.msra.mxu0 %v261
    %323 = vmatpush.bf16.msra.mxu0 %v260
    %324 = vmatpush.bf16.msra.mxu0 %v259
    %325 = vmatpush.bf16.msra.mxu0 %v258
    %326 = vmatpush.bf16.msra.mxu0 %v257
    %327 = vmatpush.bf16.msra.mxu0 %v256
    %328 = vmatmul.bf16.gmra.mxu0 %v120
    %v329 = vpop.f32.mrf.mxu0
    %v330 = vadd.f32 0.0, %v329
    %v331 = vpop.f32.mrf.mxu0
    %332 = vdwg.mxu0
    %333 = vmatpush.bf16.msra.mxu0 %v271
    %334 = vmatpush.bf16.msra.mxu0 %v270
    %335 = vmatpush.bf16.msra.mxu0 %v269
    %336 = vmatpush.bf16.msra.mxu0 %v268
    %337 = vmatpush.bf16.msra.mxu0 %v267
    %338 = vmatpush.bf16.msra.mxu0 %v266
    %339 = vmatpush.bf16.msra.mxu0 %v265
    %340 = vmatpush.bf16.msra.mxu0 %v264
    %341 = vmatmul.bf16.gmra.mxu0 %v121
    %v342 = vpop.f32.mrf.mxu0
    %v343 = vadd.f32 %v330, %v342
    %v344 = vpop.f32.mrf.mxu0
    %345 = vdwg.mxu0
    %346 = vmatpush.bf16.msra.mxu0 %v279
    %347 = vmatpush.bf16.msra.mxu0 %v278
    %348 = vmatpush.bf16.msra.mxu0 %v277
    %349 = vmatpush.bf16.msra.mxu0 %v276
    %350 = vmatpush.bf16.msra.mxu0 %v275
    %351 = vmatpush.bf16.msra.mxu0 %v274
    %352 = vmatpush.bf16.msra.mxu0 %v273
    %353 = vmatpush.bf16.msra.mxu0 %v272
    %354 = vmatmul.bf16.gmra.mxu0 %v122
    %v355 = vpop.f32.mrf.mxu0
    %v356 = vadd.f32 %v343, %v355
    %v357 = vpop.f32.mrf.mxu0
    %358 = vdwg.mxu0
    %359 = vmatpush.bf16.msra.mxu0 %v287
    %360 = vmatpush.bf16.msra.mxu0 %v286
    %361 = vmatpush.bf16.msra.mxu0 %v285
    %362 = vmatpush.bf16.msra.mxu0 %v284
    %363 = vmatpush.bf16.msra.mxu0 %v283
    %364 = vmatpush.bf16.msra.mxu0 %v282
    %365 = vmatpush.bf16.msra.mxu0 %v281
    %366 = vmatpush.bf16.msra.mxu0 %v280
    %367 = vmatmul.bf16.gmra.mxu0 %v123
    %v368 = vpop.f32.mrf.mxu0
    %v369 = vadd.f32 %v356, %v368
    %v370 = vpop.f32.mrf.mxu0
    %371 = vdwg.mxu0
    %v372 = vadd.f32 %v47, %v369
    %373 = vst [vmem:[#allocation2] sm:$0xff] %v372
    // Predicated region
    $region22: #{tpu_custom_call.1} parent=1 // pred_check
      %p374 = pneg %p42
    $region23: #{tpu_custom_call.1} parent=1 // pred_check_branch
      %376 = sbr.rel (%p374) target = $region25
    $region24: #{tpu_custom_call.1} parent=1 // pred_region
      %v377 = vld [vmem:[#allocation2] sm:$0xff]
      %378 = vst [vmem:[#allocation8] sm:$0xff] %v377
    $region25: #{tpu_custom_call.1} parent=1 // pred_fallthru
      _
    // Predicated region
    $region26: #{tpu_custom_call.1} parent=1 // pred_check
      _
    $region27: #{tpu_custom_call.1} parent=1 // pred_check_branch
      %380 = sbr.rel (0) target = $region29
    $region28: #{tpu_custom_call.1} parent=1 // pred_region
      %382 = vsyncadd [#allocation5], 0
      %s384 = sshll.u32 [#allocation8], 4
      %s385 = int_to_ptr.vmem [resolvable:$true] %s384
      %s386 = sshll.u32 %s2, 4
      %s387 = int_to_ptr.hbm [resolvable:$true] %s386
      %389 = dma.vmem_to_hbm [thread:$0]  %s385, 128, %s387, [#allocation5]
    $region29: #{tpu_custom_call.1} parent=1 // pred_fallthru
      _
    // Predicated region
    $region30: #{tpu_custom_call.1} parent=1 // pred_check
      _
    $region31: #{tpu_custom_call.1} parent=1 // pred_check_branch
      %391 = sbr.rel (0) target = $region33
    $region32: #{tpu_custom_call.1} parent=1 // pred_region
      %393 = dma.done [#allocation5], 128
    $region33: #{tpu_custom_call.1} parent=1 // pred_fallthru
      _
    %394 = vsyncpa [#allocation4], 1
    %395 = vsyncpa [#allocation7], 1
    %396 = vsyncpa [#allocation5], 1

</llo_original>
